<compile_context>
chip_gen: v7x
topology: tpu7x:2x2x1
jax: 0.10.0
libtpu: 0.0.40
codegen_flags: <defaults>
</compile_context>

<pallas_src>
import functools

import jax
import jax.numpy as jnp
import numpy as np
from jax.experimental import pallas as pl
from jax.experimental.pallas import tpu as pltpu

BN_EPS = 1e-5


def _prediction_mlp_kernel(x_ref, w1_ref, gamma_ref, beta_ref, w2_ref, b2_ref,
                           o_ref, h_scr, sum_scr, sq_scr, scale_scr, shift_scr,
                           *, tile_b, batch):
    phase = pl.program_id(0)
    i = pl.program_id(1)
    row0 = pl.multiple_of(i * tile_b, tile_b)

    @pl.when(phase == 0)
    def _matmul1_and_stats():
        @pl.when(i == 0)
        def _init():
            sum_scr[...] = jnp.zeros_like(sum_scr)
            sq_scr[...] = jnp.zeros_like(sq_scr)

        # Linear1 on the MXU with bf16 operands, f32 accumulation.
        # b1 is omitted: training-mode BatchNorm subtracts the batch mean,
        # which cancels the constant bias exactly (variance is shift-invariant).
        h = jnp.dot(x_ref[...], w1_ref[...], preferred_element_type=jnp.float32)

        # Keep h resident in VMEM at the MXU dtype (halves scratch + vst traffic).
        h_scr[pl.ds(row0, tile_b), :] = h.astype(h_scr.dtype)

        # One-pass BN statistics, accumulated in f32 from the f32 matmul result.
        # TODO(synk): accumulate (8, hidden) sublane partials (defer the
        # cross-sublane reduce to phase 1) and split per-core for v7x's 2nd TC.
        sum_scr[...] += jnp.sum(h, axis=0, keepdims=True)
        sq_scr[...] += jnp.sum(h * h, axis=0, keepdims=True)

    @pl.when(phase == 1)
    def _bn_relu_matmul2():
        # Finalize BN scale/shift exactly once and cache for all batch tiles.
        @pl.when(i == 0)
        def _finalize_stats():
            inv_b = jnp.float32(1.0 / batch)
            mean = sum_scr[...] * inv_b
            var = jnp.maximum(sq_scr[...] * inv_b - mean * mean, 0.0)  # biased
            scale = gamma_ref[...].astype(jnp.float32) * jax.lax.rsqrt(var + BN_EPS)
            scale_scr[...] = scale
            shift_scr[...] = beta_ref[...].astype(jnp.float32) - mean * scale

        h = h_scr[pl.ds(row0, tile_b), :].astype(jnp.float32)
        h = jnp.maximum(h * scale_scr[...] + shift_scr[...], 0.0)

        y = jnp.dot(h.astype(w2_ref.dtype), w2_ref[...],
                    preferred_element_type=jnp.float32)
        o_ref[...] = (y + b2_ref[...].astype(jnp.float32)).astype(o_ref.dtype)


def _pick_batch_tile(batch):
    # MXU-friendly tiles; prefer leaving >= 2 batch tiles so the x-load /
    # y-store pipeline has compute to overlap with (1 tile => zero overlap).
    candidates = (256, 128, 64, 32, 16, 8)
    for t in candidates:
        if batch % t == 0 and batch // t >= 2:
            return t
    for t in candidates:
        if batch % t == 0:
            return t
    return batch


def _vmem_limit_bytes(batch, in_dim, hidden, out_dim, tile_b,
                      mxu_bytes, out_bytes):
    tiles = 2 * tile_b * in_dim * mxu_bytes          # double-buffered x tiles
    tiles += 2 * tile_b * out_dim * out_bytes        # double-buffered y tiles
    weights = 2 * (in_dim * hidden + hidden * out_dim) * mxu_bytes
    params = 2 * (2 * hidden + out_dim) * 4          # gamma, beta, b2
    scratch = batch * hidden * mxu_bytes             # resident h (bf16)
    scratch += 4 * hidden * 4                        # sum, sq, scale, shift
    footprint = tiles + weights + params + scratch
    # 8 MiB headroom for Mosaic internal scratch; clamp to [default scoped,
    # smallest physical VMEM across generations (v7x: 64 MiB)].
    return int(min(64 << 20, max(32 << 20, footprint + (8 << 20))))


def prediction_mlp(x, w1, b1, gamma, beta, w2, b2, *, tile_b=None,
                   mxu_dtype=jnp.bfloat16):
    del b1  # cancelled exactly by BatchNorm's (training-mode) batch-mean subtraction
    batch, in_dim = x.shape
    hidden = w1.shape[1]
    out_dim = w2.shape[1]
    out_dtype = x.dtype

    if tile_b is None:
        tile_b = _pick_batch_tile(batch)
    assert batch % tile_b == 0, "batch must be divisible by the batch tile"
    n_tiles = batch // tile_b

    # Feed the MXU at its native dtype; accumulation / BN math stay f32.
    x_mx = x.astype(mxu_dtype)
    w1_mx = w1.astype(mxu_dtype)
    w2_mx = w2.astype(mxu_dtype)

    kernel = functools.partial(_prediction_mlp_kernel,
                               tile_b=tile_b, batch=batch)

    # Resident parameters: constant block index -> DMA'd once, kept in VMEM.
    const = lambda shape: pl.BlockSpec(shape, lambda p, i: (0, 0))

    grid_spec = pltpu.PrefetchScalarGridSpec(
        num_scalar_prefetch=0,
        grid=(2, n_tiles),  # (phase, batch tile); phase is the outer/slow axis
        in_specs=[
            # x: streamed tile-by-tile in phase 0; parked on the last tile
            # during phase 1 so it is never re-fetched.
            # TODO(synk): pipeline_mode=pl.Buffered(3) here to hide DMA jitter
            # on v6e/v7x once operands are bf16 (kept default-depth for safety).
            pl.BlockSpec((tile_b, in_dim),
                         lambda p, i: (i * (1 - p) + (n_tiles - 1) * p, 0)),
            const((in_dim, hidden)),    # W1 (pre-transposed vs torch)
            const((1, hidden)),         # gamma
            const((1, hidden)),         # beta
            const((hidden, out_dim)),   # W2 (pre-transposed vs torch)
            const((1, out_dim)),        # b2
        ],
        # Output tiles only advance in phase 1 (block index pinned to 0 during
        # phase 0, so no writeback happens before a tile is actually written).
        out_specs=pl.BlockSpec((tile_b, out_dim), lambda p, i: (i * p, 0)),
        scratch_shapes=[
            pltpu.VMEM((batch, hidden), mxu_dtype),   # resident h activations (bf16)
            pltpu.VMEM((1, hidden), jnp.float32),     # sum(h)
            pltpu.VMEM((1, hidden), jnp.float32),     # sum(h*h)
            pltpu.VMEM((1, hidden), jnp.float32),     # cached BN scale
            pltpu.VMEM((1, hidden), jnp.float32),     # cached BN shift
        ],
    )

    mxu_bytes = jnp.dtype(mxu_dtype).itemsize
    out_bytes = jnp.dtype(out_dtype).itemsize

    return pl.pallas_call(
        kernel,
        out_shape=jax.ShapeDtypeStruct((batch, out_dim), out_dtype),
        grid_spec=grid_spec,
        compiler_params=pltpu.CompilerParams(
            # Phase axis is a true sequential dependency (full-batch BN stats);
            # batch tiles also accumulate into a shared stats scratch, so both
            # axes stay "arbitrary".
            # TODO(synk): per-core partial stats + combine to use v7x's 2nd TC.
            dimension_semantics=("arbitrary", "arbitrary"),
            vmem_limit_bytes=_vmem_limit_bytes(batch, in_dim, hidden, out_dim,
                                               tile_b, mxu_bytes, out_bytes),
        ),
    )(x_mx, w1_mx, gamma, beta, w2_mx, b2)


def reference(x, w1, b1, gamma, beta, w2, b2):
    h = x @ w1 + b1
    mean = h.mean(0, keepdims=True)
    var = ((h - mean) ** 2).mean(0, keepdims=True)
    h = (h - mean) / jnp.sqrt(var + BN_EPS)
    h = h * gamma + beta
    h = jnp.maximum(h, 0.0)
    return h @ w2 + b2


if __name__ == "__main__":
    # Small shapes consistent with the module's (in_dim, hidden_dim, out_dim)
    # bottleneck structure (scaled down from 2048/512/2048).
    B, in_dim, hidden_dim, out_dim = 8, 32, 16, 32

    key = jax.random.PRNGKey(0)
    kx, kw1, kb1, kw2, kb2 = jax.random.split(key, 5)

    x = jax.random.normal(kx, (B, in_dim), dtype=jnp.float32)

    lim1 = 1.0 / np.sqrt(in_dim)
    w1 = jax.random.uniform(kw1, (in_dim, hidden_dim), jnp.float32, -lim1, lim1)
    b1 = jax.random.uniform(kb1, (1, hidden_dim), jnp.float32, -lim1, lim1)
    gamma = jnp.ones((1, hidden_dim), jnp.float32)   # BatchNorm1d weight init
    beta = jnp.zeros((1, hidden_dim), jnp.float32)   # BatchNorm1d bias init
    lim2 = 1.0 / np.sqrt(hidden_dim)
    w2 = jax.random.uniform(kw2, (hidden_dim, out_dim), jnp.float32, -lim2, lim2)
    b2 = jax.random.uniform(kb2, (1, out_dim), jnp.float32, -lim2, lim2)

    out = prediction_mlp(x, w1, b1, gamma, beta, w2, b2)
    out = jax.block_until_ready(out)

    ref = reference(x, w1, b1, gamma, beta, w2, b2)
    # bf16 MXU operands vs f32 reference -> loose-but-meaningful tolerance.
    np.testing.assert_allclose(np.asarray(out), np.asarray(ref),
                               rtol=5e-2, atol=5e-2)
    print("KERNEL_OK")
</pallas_src>

<mosaic_0001>
module attributes {stable_mosaic.version = 11 : i64} {
  func.func @_prediction_mlp_kernel(%arg0: i32, %arg1: i32, %arg2: memref<8x32xbf16, #tpu.memory_space<vmem>>, %arg3: memref<32x16xbf16, #tpu.memory_space<vmem>>, %arg4: memref<1x16xf32, #tpu.memory_space<vmem>>, %arg5: memref<1x16xf32, #tpu.memory_space<vmem>>, %arg6: memref<16x32xbf16, #tpu.memory_space<vmem>>, %arg7: memref<1x32xf32, #tpu.memory_space<vmem>>, %arg8: memref<8x32xf32, #tpu.memory_space<vmem>>, %arg9: memref<8x16xbf16, #tpu.memory_space<vmem>>, %arg10: memref<1x16xf32, #tpu.memory_space<vmem>>, %arg11: memref<1x16xf32, #tpu.memory_space<vmem>>, %arg12: memref<1x16xf32, #tpu.memory_space<vmem>>, %arg13: memref<1x16xf32, #tpu.memory_space<vmem>>) attributes {dimension_semantics = [#tpu.dimension_semantics<arbitrary>, #tpu.dimension_semantics<arbitrary>], iteration_bounds = array<i64: 2, 1>, scalar_prefetch = 0 : i64, scratch_operands = 5 : i64, tpu.core_type = #tpu.core_type<tc>, window_params = [{transform_indices = @transform_0, window_bounds = array<i64: 8, 32>}, {pipeline_mode = #tpu.pipeline_mode<synchronous>, transform_indices = @transform_1, window_bounds = array<i64: 32, 16>}, {pipeline_mode = #tpu.pipeline_mode<synchronous>, transform_indices = @transform_2, window_bounds = array<i64: 1, 16>}, {pipeline_mode = #tpu.pipeline_mode<synchronous>, transform_indices = @transform_3, window_bounds = array<i64: 1, 16>}, {pipeline_mode = #tpu.pipeline_mode<synchronous>, transform_indices = @transform_4, window_bounds = array<i64: 16, 32>}, {pipeline_mode = #tpu.pipeline_mode<synchronous>, transform_indices = @transform_5, window_bounds = array<i64: 1, 32>}, {transform_indices = @transform_6, window_bounds = array<i64: 8, 32>}]} {
    %c8_i32 = arith.constant 8 : i32
    %0 = arith.muli %arg1, %c8_i32 : i32
    %1 = tpu.assume_multiple %0, 8 : i32
    %c0_i32 = arith.constant 0 : i32
    %2 = arith.cmpi eq, %arg0, %c0_i32 : i32
    %3 = arith.extui %2 : i1 to i32
    %c0_i32_0 = arith.constant 0 : i32
    %4 = arith.cmpi ne, %3, %c0_i32_0 : i32
    scf.if %4 {
      %c0_i32_2 = arith.constant 0 : i32
      %8 = arith.cmpi eq, %arg1, %c0_i32_2 : i32
      %9 = arith.extui %8 : i1 to i32
      %c0_i32_3 = arith.constant 0 : i32
      %10 = arith.cmpi ne, %9, %c0_i32_3 : i32
      scf.if %10 {
        %cst_18 = arith.constant 0.000000e+00 : f32
        %28 = vector.broadcast %cst_18 : f32 to vector<1x16xf32>
        %c0_19 = arith.constant 0 : index
        %c0_20 = arith.constant 0 : index
        %29 = vector.load %arg10[%c0_19, %c0_20] : memref<1x16xf32, #tpu.memory_space<vmem>>, vector<1x16xf32>
        tpu.vector_store %arg10[%c0_19, %c0_20], %28 {strides = array<i32>} : memref<1x16xf32, #tpu.memory_space<vmem>>, vector<1x16xf32>,
        %cst_21 = arith.constant 0.000000e+00 : f32
        %30 = vector.broadcast %cst_21 : f32 to vector<1x16xf32>
        %c0_22 = arith.constant 0 : index
        %c0_23 = arith.constant 0 : index
        %31 = vector.load %arg11[%c0_22, %c0_23] : memref<1x16xf32, #tpu.memory_space<vmem>>, vector<1x16xf32>
        tpu.vector_store %arg11[%c0_22, %c0_23], %30 {strides = array<i32>} : memref<1x16xf32, #tpu.memory_space<vmem>>, vector<1x16xf32>,
      } else {
      }
      %c0 = arith.constant 0 : index
      %c0_4 = arith.constant 0 : index
      %11 = vector.load %arg2[%c0, %c0_4] : memref<8x32xbf16, #tpu.memory_space<vmem>>, vector<8x32xbf16>
      %c0_5 = arith.constant 0 : index
      %c0_6 = arith.constant 0 : index
      %12 = vector.load %arg3[%c0_5, %c0_6] : memref<32x16xbf16, #tpu.memory_space<vmem>>, vector<32x16xbf16>
      %cst = arith.constant dense<0.000000e+00> : vector<8x16xf32>
      %13 = tpu.matmul %11, %12, %cst {dimension_numbers = #tpu.dot_dimension_numbers<[1], [0], [0], [1], [0, 0, 1, 1], [], []>} : vector<8x32xbf16>, vector<32x16xbf16>, vector<8x16xf32> -> vector<8x16xf32>
      %14 = arith.truncf %13 : vector<8x16xf32> to vector<8x16xbf16>
      %15 = arith.index_cast %1 : i32 to index
      %c0_7 = arith.constant 0 : index
      %16 = vector.load %arg9[%15, %c0_7] : memref<8x16xbf16, #tpu.memory_space<vmem>>, vector<8x16xbf16>
      tpu.vector_store %arg9[%15, %c0_7], %14 {strides = array<i32>} : memref<8x16xbf16, #tpu.memory_space<vmem>>, vector<8x16xbf16>,
      %c0_8 = arith.constant 0 : index
      %c0_9 = arith.constant 0 : index
      %17 = vector.load %arg10[%c0_8, %c0_9] : memref<1x16xf32, #tpu.memory_space<vmem>>, vector<1x16xf32>
      %cst_10 = arith.constant dense<0.000000e+00> : vector<16xf32>
      %18 = vector.multi_reduction <add>, %13, %cst_10 [0] : vector<8x16xf32> to vector<16xf32>
      %19 = vector.shape_cast %18 : vector<16xf32> to vector<1x16xf32>
      %20 = arith.addf %17, %19 : vector<1x16xf32>
      %c0_11 = arith.constant 0 : index
      %c0_12 = arith.constant 0 : index
      %21 = vector.load %arg10[%c0_11, %c0_12] : memref<1x16xf32, #tpu.memory_space<vmem>>, vector<1x16xf32>
      tpu.vector_store %arg10[%c0_11, %c0_12], %20 {strides = array<i32>} : memref<1x16xf32, #tpu.memory_space<vmem>>, vector<1x16xf32>,
      %c0_13 = arith.constant 0 : index
      %c0_14 = arith.constant 0 : index
      %22 = vector.load %arg11[%c0_13, %c0_14] : memref<1x16xf32, #tpu.memory_space<vmem>>, vector<1x16xf32>
      %23 = arith.mulf %13, %13 : vector<8x16xf32>
      %cst_15 = arith.constant dense<0.000000e+00> : vector<16xf32>
      %24 = vector.multi_reduction <add>, %23, %cst_15 [0] : vector<8x16xf32> to vector<16xf32>
      %25 = vector.shape_cast %24 : vector<16xf32> to vector<1x16xf32>
      %26 = arith.addf %22, %25 : vector<1x16xf32>
      %c0_16 = arith.constant 0 : index
      %c0_17 = arith.constant 0 : index
      %27 = vector.load %arg11[%c0_16, %c0_17] : memref<1x16xf32, #tpu.memory_space<vmem>>, vector<1x16xf32>
      tpu.vector_store %arg11[%c0_16, %c0_17], %26 {strides = array<i32>} : memref<1x16xf32, #tpu.memory_space<vmem>>, vector<1x16xf32>,
    } else {
    }
    %c1_i32 = arith.constant 1 : i32
    %5 = arith.cmpi eq, %arg0, %c1_i32 : i32
    %6 = arith.extui %5 : i1 to i32
    %c0_i32_1 = arith.constant 0 : i32
    %7 = arith.cmpi ne, %6, %c0_i32_1 : i32
    scf.if %7 {
      %c0_i32_2 = arith.constant 0 : i32
      %8 = arith.cmpi eq, %arg1, %c0_i32_2 : i32
      %9 = arith.extui %8 : i1 to i32
      %c0_i32_3 = arith.constant 0 : i32
      %10 = arith.cmpi ne, %9, %c0_i32_3 : i32
      scf.if %10 {
        %c0_15 = arith.constant 0 : index
        %c0_16 = arith.constant 0 : index
        %29 = vector.load %arg10[%c0_15, %c0_16] : memref<1x16xf32, #tpu.memory_space<vmem>>, vector<1x16xf32>
        %cst_17 = arith.constant 1.250000e-01 : f32
        %30 = vector.broadcast %cst_17 : f32 to vector<1x16xf32>
        %31 = arith.mulf %29, %30 : vector<1x16xf32>
        %c0_18 = arith.constant 0 : index
        %c0_19 = arith.constant 0 : index
        %32 = vector.load %arg11[%c0_18, %c0_19] : memref<1x16xf32, #tpu.memory_space<vmem>>, vector<1x16xf32>
        %cst_20 = arith.constant 1.250000e-01 : f32
        %33 = vector.broadcast %cst_20 : f32 to vector<1x16xf32>
        %34 = arith.mulf %32, %33 : vector<1x16xf32>
        %35 = arith.mulf %31, %31 : vector<1x16xf32>
        %36 = arith.subf %34, %35 : vector<1x16xf32>
        %cst_21 = arith.constant 0.000000e+00 : f32
        %37 = vector.broadcast %cst_21 : f32 to vector<1x16xf32>
        %38 = arith.maximumf %36, %37 : vector<1x16xf32>
        %c0_22 = arith.constant 0 : index
        %c0_23 = arith.constant 0 : index
        %39 = vector.load %arg4[%c0_22, %c0_23] : memref<1x16xf32, #tpu.memory_space<vmem>>, vector<1x16xf32>
        %cst_24 = arith.constant 9.99999974E-6 : f32
        %40 = vector.broadcast %cst_24 : f32 to vector<1x16xf32>
        %41 = arith.addf %38, %40 : vector<1x16xf32>
        %42 = math.rsqrt %41 : vector<1x16xf32>
        %43 = arith.mulf %39, %42 : vector<1x16xf32>
        %c0_25 = arith.constant 0 : index
        %c0_26 = arith.constant 0 : index
        %44 = vector.load %arg12[%c0_25, %c0_26] : memref<1x16xf32, #tpu.memory_space<vmem>>, vector<1x16xf32>
        tpu.vector_store %arg12[%c0_25, %c0_26], %43 {strides = array<i32>} : memref<1x16xf32, #tpu.memory_space<vmem>>, vector<1x16xf32>,
        %c0_27 = arith.constant 0 : index
        %c0_28 = arith.constant 0 : index
        %45 = vector.load %arg5[%c0_27, %c0_28] : memref<1x16xf32, #tpu.memory_space<vmem>>, vector<1x16xf32>
        %46 = arith.mulf %31, %43 : vector<1x16xf32>
        %47 = arith.subf %45, %46 : vector<1x16xf32>
        %c0_29 = arith.constant 0 : index
        %c0_30 = arith.constant 0 : index
        %48 = vector.load %arg13[%c0_29, %c0_30] : memref<1x16xf32, #tpu.memory_space<vmem>>, vector<1x16xf32>
        tpu.vector_store %arg13[%c0_29, %c0_30], %47 {strides = array<i32>} : memref<1x16xf32, #tpu.memory_space<vmem>>, vector<1x16xf32>,
      } else {
      }
      %11 = arith.index_cast %1 : i32 to index
      %c0 = arith.constant 0 : index
      %12 = vector.load %arg9[%11, %c0] : memref<8x16xbf16, #tpu.memory_space<vmem>>, vector<8x16xbf16>
      %13 = arith.extf %12 : vector<8x16xbf16> to vector<8x16xf32>
      %c0_4 = arith.constant 0 : index
      %c0_5 = arith.constant 0 : index
      %14 = vector.load %arg12[%c0_4, %c0_5] : memref<1x16xf32, #tpu.memory_space<vmem>>, vector<1x16xf32>
      %15 = vector.broadcast %14 : vector<1x16xf32> to vector<8x16xf32>
      %16 = arith.mulf %13, %15 : vector<8x16xf32>
      %c0_6 = arith.constant 0 : index
      %c0_7 = arith.constant 0 : index
      %17 = vector.load %arg13[%c0_6, %c0_7] : memref<1x16xf32, #tpu.memory_space<vmem>>, vector<1x16xf32>
      %18 = vector.broadcast %17 : vector<1x16xf32> to vector<8x16xf32>
      %19 = arith.addf %16, %18 : vector<8x16xf32>
      %cst = arith.constant 0.000000e+00 : f32
      %20 = vector.broadcast %cst : f32 to vector<8x16xf32>
      %21 = arith.maximumf %19, %20 : vector<8x16xf32>
      %22 = arith.truncf %21 : vector<8x16xf32> to vector<8x16xbf16>
      %c0_8 = arith.constant 0 : index
      %c0_9 = arith.constant 0 : index
      %23 = vector.load %arg6[%c0_8, %c0_9] : memref<16x32xbf16, #tpu.memory_space<vmem>>, vector<16x32xbf16>
      %cst_10 = arith.constant dense<0.000000e+00> : vector<8x32xf32>
      %24 = tpu.matmul %22, %23, %cst_10 {dimension_numbers = #tpu.dot_dimension_numbers<[1], [0], [0], [1], [0, 0, 1, 1], [], []>} : vector<8x16xbf16>, vector<16x32xbf16>, vector<8x32xf32> -> vector<8x32xf32>
      %c0_11 = arith.constant 0 : index
      %c0_12 = arith.constant 0 : index
      %25 = vector.load %arg7[%c0_11, %c0_12] : memref<1x32xf32, #tpu.memory_space<vmem>>, vector<1x32xf32>
      %26 = vector.broadcast %25 : vector<1x32xf32> to vector<8x32xf32>
      %27 = arith.addf %24, %26 : vector<8x32xf32>
      %c0_13 = arith.constant 0 : index
      %c0_14 = arith.constant 0 : index
      %28 = vector.load %arg8[%c0_13, %c0_14] : memref<8x32xf32, #tpu.memory_space<vmem>>, vector<8x32xf32>
      tpu.vector_store %arg8[%c0_13, %c0_14], %27 {strides = array<i32>} : memref<8x32xf32, #tpu.memory_space<vmem>>, vector<8x32xf32>,
    } else {
    }
    return
  }
  func.func @transform_0(%arg0: i32, %arg1: i32) -> (i32, i32) {
    %c1_i32 = arith.constant 1 : i32
    %0 = arith.subi %c1_i32, %arg0 : i32
    %1 = arith.muli %arg1, %0 : i32
    %c0_i32 = arith.constant 0 : i32
    %2 = arith.muli %c0_i32, %arg0 : i32
    %3 = arith.addi %1, %2 : i32
    %c0_i32_0 = arith.constant 0 : i32
    %c0_i32_1 = arith.constant 0 : i32
    return %3, %c0_i32_0 : i32, i32
  }
  func.func @transform_1(%arg0: i32, %arg1: i32) -> (i32, i32) {
    %c0_i32 = arith.constant 0 : i32
    %c0_i32_0 = arith.constant 0 : i32
    %c0_i32_1 = arith.constant 0 : i32
    return %c0_i32, %c0_i32_0 : i32, i32
  }
  func.func @transform_2(%arg0: i32, %arg1: i32) -> (i32, i32) {
    %c0_i32 = arith.constant 0 : i32
    %c0_i32_0 = arith.constant 0 : i32
    %c0_i32_1 = arith.constant 0 : i32
    return %c0_i32, %c0_i32_0 : i32, i32
  }
  func.func @transform_3(%arg0: i32, %arg1: i32) -> (i32, i32) {
    %c0_i32 = arith.constant 0 : i32
    %c0_i32_0 = arith.constant 0 : i32
    %c0_i32_1 = arith.constant 0 : i32
    return %c0_i32, %c0_i32_0 : i32, i32
  }
  func.func @transform_4(%arg0: i32, %arg1: i32) -> (i32, i32) {
    %c0_i32 = arith.constant 0 : i32
    %c0_i32_0 = arith.constant 0 : i32
    %c0_i32_1 = arith.constant 0 : i32
    return %c0_i32, %c0_i32_0 : i32, i32
  }
  func.func @transform_5(%arg0: i32, %arg1: i32) -> (i32, i32) {
    %c0_i32 = arith.constant 0 : i32
    %c0_i32_0 = arith.constant 0 : i32
    %c0_i32_1 = arith.constant 0 : i32
    return %c0_i32, %c0_i32_0 : i32, i32
  }
  func.func @transform_6(%arg0: i32, %arg1: i32) -> (i32, i32) {
    %0 = arith.muli %arg1, %arg0 : i32
    %c0_i32 = arith.constant 0 : i32
    %c0_i32_0 = arith.constant 0 : i32
    return %0, %c0_i32 : i32, i32
  }
}

</mosaic_0001>

<llo_original>
// kernel: tpu_custom_call.1
$region0: #{tpu_custom_call.1}
  #allocation0 [shape = 'u32[]', space=smem, size = 0x4, offset = 0x4, fixed_abs, tag = 'smem constant byte address 0x4 - core index']
  #allocation1 [shape = 'u32[144,128]{1,0:T(1,128)}', space=vmem, size = 0x12000, scoped, tag = 'internal scratch']
  #allocation2 [shape = 'bf16[8,16]{1,0:T(8,128)(2,1)}', space=vmem, size = 0x800, scoped, tag = 'scratch operand']
  #allocation3 [shape = 'f32[1,16]{1,0:T(1,128)}', space=vmem, size = 0x200, scoped, tag = 'scratch operand']
  #allocation4 [shape = 'f32[1,16]{1,0:T(1,128)}', space=vmem, size = 0x200, scoped, tag = 'scratch operand']
  #allocation5 [shape = 'f32[1,16]{1,0:T(1,128)}', space=vmem, size = 0x200, scoped, tag = 'scratch operand']
  #allocation6 [shape = 'f32[1,16]{1,0:T(1,128)}', space=vmem, size = 0x200, scoped, tag = 'scratch operand']
  %s0 = inlined_call_operand.vmem [shape: bf16[8,32], index: 0, kind: input, shape index: {}]
  %s1 = inlined_call_operand.vmem [shape: bf16[32,16], index: 1, kind: input, shape index: {}]
  %s2 = inlined_call_operand.vmem [shape: f32[1,16], index: 2, kind: input, shape index: {}]
  %s3 = inlined_call_operand.vmem [shape: f32[1,16], index: 3, kind: input, shape index: {}]
  %s4 = inlined_call_operand.vmem [shape: bf16[16,32], index: 4, kind: input, shape index: {}]
  %s5 = inlined_call_operand.vmem [shape: f32[1,32], index: 5, kind: input, shape index: {}]
  %s6 = inlined_call_operand.hbm [shape: f32[8,32], index: 6, kind: output, shape index: {}]
  %s7 = sld [smem:[#allocation0]]
  $region73: #{tpu_custom_call.1} parent=0
    _
  %s9 = ssub.s32 1, %s7
  %s10 = scalar_select 0, %s9, %s7
  $region1: #{tpu_custom_call.1} parent=0
    #allocation7 [shape = 'u8[8192]{0}', space=vmem, size = 0x2000, scoped, tag = 'output window, operand 0']
    #allocation8 [shape = 's32[2]{0}', space=sflag, size = 0x8, scoped, tag = 'scoped memory for tpu_custom_call.1']
    %11 = vsyncpa [#allocation8], 0
    %s12 = scalar_lea.sflag [#allocation8], 1
    %13 = vsyncpa %s12, 0
    loop: start=0, step=1, limit=4
    $region2: #{tpu_custom_call.1} parent=1 // loop_pre_header
      _
    $region3: #{tpu_custom_call.1} parent=1 // loop_header
      %s15 = sphi 0, %s19
      %p16 = scmp.ge.s32.totalorder %s15, 4
      %s22 = sphi 0, %s34
      %s23 = sphi 0, %s30
      %s24 = sphi 0, %s22
      %s25 = sphi 0, %s23
      %s26 = sphi 0, %s24
      %s27 = sphi 0, %s25
      %s41 = sphi 0, %s43
      %s44 = sphi 0, %s41
      %s45 = sphi 0, %s44
      %s61 = sphi 0, %s45
      %s65 = sphi 0, %s65
      %s67 = sphi 0, %s65
      %s68 = sphi 0, %s67
      %s82 = sphi 0, %s68
      %s86 = sphi 0, %s86
      %s88 = sphi 0, %s86
      %s89 = sphi 0, %s88
      %s103 = sphi 0, %s89
      %s107 = sphi 0, %s107
      %s109 = sphi 0, %s107
      %s110 = sphi 0, %s109
      %s124 = sphi 0, %s110
      %s128 = sphi 0, %s128
      %s130 = sphi 0, %s128
      %s131 = sphi 0, %s130
      %s145 = sphi 0, %s131
      %s149 = sphi 0, %s149
      %s151 = sphi 0, %s149
      %s152 = sphi 0, %s151
      %s166 = sphi 0, %s152
      %s174 = sphi 0, %s176
      %s177 = sphi 0, %s174
      %s178 = sphi 0, %s177
      %s194 = sphi 0, %s178
    $region4: #{tpu_custom_call.1} parent=1 // loop_header_branch
      %18 = sbr.rel (%p16) target = $region8
    $region5: #{tpu_custom_call.1} parent=1 // loop_body
      %s20 = ssub.s32 %s15, 1
      %s21 = ssub.s32 %s15, 2
      %s28 = sadd.s32 1, %s23
      %p29 = scmp.ge.s32.totalorder %s28, 1
      %s30 = scalar_select %p29, 0, %s28
      %s31 = sadd.s32 1, %s22
      %s32 = scalar_select %p29, %s31, %s22
      %p33 = scmp.ge.s32.totalorder %s32, 2
      %s34 = scalar_select %p33, 0, %s32
      %s35 = ssub.s32 1, %s22
      %s36 = smul.u32 %s23, %s35
      %s37 = ssub.s32 1, %s34
      %s38 = smul.u32 %s30, %s37
      %s39 = ssub.s32 %s36, %s38
      %p40 = scmp.eq.s32.totalorder %s39, 0
      %s42 = sadd.s32 %s41, 1
      %s43 = scalar_select %p40, %s41, %s42
      %p46 = pneg %p40
      %p47 = scmp.eq.s32.totalorder %s15, 1
      %p48 = por %p46, %p47
      %p49 = scmp.ne.s32.totalorder %s41, %s44
      %p50 = scmp.eq.s32.totalorder %s15, 0
      %p51 = por %p49, %p50
      %p52 = scmp.ne.s32.totalorder %s41, %s44
      %p53 = scmp.eq.s32.totalorder %s20, 1
      %p54 = por %p52, %p53
      %p55 = scmp.ne.s32.totalorder %s44, %s45
      %p56 = scmp.eq.s32.totalorder %s20, 0
      %p57 = por %p55, %p56
      %p58 = scmp.ne.s32.totalorder %s44, %s45
      %p59 = scmp.eq.s32.totalorder %s21, 1
      %p60 = por %p58, %p59
      %p62 = scmp.ne.s32.totalorder %s45, %s61
      %p63 = scmp.eq.s32.totalorder %s21, 0
      %p64 = por %p62, %p63
      %s66 = sadd.s32 %s65, 1
      %p69 = scmp.eq.s32.totalorder %s15, 1
      %p70 = scmp.ne.s32.totalorder %s65, %s67
      %p71 = scmp.eq.s32.totalorder %s15, 0
      %p72 = por %p70, %p71
      %p73 = scmp.ne.s32.totalorder %s65, %s67
      %p74 = scmp.eq.s32.totalorder %s20, 1
      %p75 = por %p73, %p74
      %p76 = scmp.ne.s32.totalorder %s67, %s68
      %p77 = scmp.eq.s32.totalorder %s20, 0
      %p78 = por %p76, %p77
      %p79 = scmp.ne.s32.totalorder %s67, %s68
      %p80 = scmp.eq.s32.totalorder %s21, 1
      %p81 = por %p79, %p80
      %p83 = scmp.ne.s32.totalorder %s68, %s82
      %p84 = scmp.eq.s32.totalorder %s21, 0
      %p85 = por %p83, %p84
      %s87 = sadd.s32 %s86, 1
      %p90 = scmp.eq.s32.totalorder %s15, 1
      %p91 = scmp.ne.s32.totalorder %s86, %s88
      %p92 = scmp.eq.s32.totalorder %s15, 0
      %p93 = por %p91, %p92
      %p94 = scmp.ne.s32.totalorder %s86, %s88
      %p95 = scmp.eq.s32.totalorder %s20, 1
      %p96 = por %p94, %p95
      %p97 = scmp.ne.s32.totalorder %s88, %s89
      %p98 = scmp.eq.s32.totalorder %s20, 0
      %p99 = por %p97, %p98
      %p100 = scmp.ne.s32.totalorder %s88, %s89
      %p101 = scmp.eq.s32.totalorder %s21, 1
      %p102 = por %p100, %p101
      %p104 = scmp.ne.s32.totalorder %s89, %s103
      %p105 = scmp.eq.s32.totalorder %s21, 0
      %p106 = por %p104, %p105
      %s108 = sadd.s32 %s107, 1
      %p111 = scmp.eq.s32.totalorder %s15, 1
      %p112 = scmp.ne.s32.totalorder %s107, %s109
      %p113 = scmp.eq.s32.totalorder %s15, 0
      %p114 = por %p112, %p113
      %p115 = scmp.ne.s32.totalorder %s107, %s109
      %p116 = scmp.eq.s32.totalorder %s20, 1
      %p117 = por %p115, %p116
      %p118 = scmp.ne.s32.totalorder %s109, %s110
      %p119 = scmp.eq.s32.totalorder %s20, 0
      %p120 = por %p118, %p119
      %p121 = scmp.ne.s32.totalorder %s109, %s110
      %p122 = scmp.eq.s32.totalorder %s21, 1
      %p123 = por %p121, %p122
      %p125 = scmp.ne.s32.totalorder %s110, %s124
      %p126 = scmp.eq.s32.totalorder %s21, 0
      %p127 = por %p125, %p126
      %s129 = sadd.s32 %s128, 1
      %p132 = scmp.eq.s32.totalorder %s15, 1
      %p133 = scmp.ne.s32.totalorder %s128, %s130
      %p134 = scmp.eq.s32.totalorder %s15, 0
      %p135 = por %p133, %p134
      %p136 = scmp.ne.s32.totalorder %s128, %s130
      %p137 = scmp.eq.s32.totalorder %s20, 1
      %p138 = por %p136, %p137
      %p139 = scmp.ne.s32.totalorder %s130, %s131
      %p140 = scmp.eq.s32.totalorder %s20, 0
      %p141 = por %p139, %p140
      %p142 = scmp.ne.s32.totalorder %s130, %s131
      %p143 = scmp.eq.s32.totalorder %s21, 1
      %p144 = por %p142, %p143
      %p146 = scmp.ne.s32.totalorder %s131, %s145
      %p147 = scmp.eq.s32.totalorder %s21, 0
      %p148 = por %p146, %p147
      %s150 = sadd.s32 %s149, 1
      %p153 = scmp.eq.s32.totalorder %s15, 1
      %p154 = scmp.ne.s32.totalorder %s149, %s151
      %p155 = scmp.eq.s32.totalorder %s15, 0
      %p156 = por %p154, %p155
      %p157 = scmp.ne.s32.totalorder %s149, %s151
      %p158 = scmp.eq.s32.totalorder %s20, 1
      %p159 = por %p157, %p158
      %p160 = scmp.ne.s32.totalorder %s151, %s152
      %p161 = scmp.eq.s32.totalorder %s20, 0
      %p162 = por %p160, %p161
      %p163 = scmp.ne.s32.totalorder %s151, %s152
      %p164 = scmp.eq.s32.totalorder %s21, 1
      %p165 = por %p163, %p164
      %p167 = scmp.ne.s32.totalorder %s152, %s166
      %p168 = scmp.eq.s32.totalorder %s21, 0
      %p169 = por %p167, %p168
      %s170 = smul.u32 %s23, %s22
      %s171 = smul.u32 %s30, %s34
      %s172 = ssub.s32 %s170, %s171
      %p173 = scmp.eq.s32.totalorder %s172, 0
      %s175 = sadd.s32 %s174, 1
      %s176 = scalar_select %p173, %s174, %s175
      %p179 = pneg %p173
      %p180 = scmp.eq.s32.totalorder %s15, 1
      %p181 = por %p179, %p180
      %p182 = scmp.ne.s32.totalorder %s174, %s177
      %p183 = scmp.eq.s32.totalorder %s15, 0
      %p184 = por %p182, %p183
      %p185 = scmp.ne.s32.totalorder %s174, %s177
      %p186 = scmp.eq.s32.totalorder %s20, 1
      %p187 = por %p185, %p186
      %p188 = scmp.ne.s32.totalorder %s177, %s178
      %p189 = scmp.eq.s32.totalorder %s20, 0
      %p190 = por %p188, %p189
      %p191 = scmp.ne.s32.totalorder %s177, %s178
      %p192 = scmp.eq.s32.totalorder %s21, 1
      %p193 = por %p191, %p192
      %p195 = scmp.ne.s32.totalorder %s178, %s194
      %p196 = scmp.eq.s32.totalorder %s21, 0
      %p197 = por %p195, %p196
      %p198 = scmp.le.s32.totalorder 1, %s15
      %p199 = scmp.lt.s32.totalorder %s15, 3
      %p200 = pnand %p198, %p199
      %p201 = pneg %p200
      // Predicated region
      $region9: #{tpu_custom_call.1} parent=5 // pred_check
        _
      $region10: #{tpu_custom_call.1} parent=5 // pred_check_branch
        %203 = sbr.rel (%p200) target = $region12
      $region11: #{tpu_custom_call.1} parent=5 // pred_region
        %s204 = ssub.s32 %s15, 1
        // Predicated region
        $region13: #{tpu_custom_call.1} parent=11 // pred_check
          %p205 = pneg %p78
        $region14: #{tpu_custom_call.1} parent=11 // pred_check_branch
          %207 = sbr.rel (%p205) target = $region16
        $region15: #{tpu_custom_call.1} parent=11 // pred_region
          _
        $region16: #{tpu_custom_call.1} parent=11 // pred_fallthru
          _
        // Predicated region
        $region17: #{tpu_custom_call.1} parent=11 // pred_check
          %p208 = pneg %p99
        $region18: #{tpu_custom_call.1} parent=11 // pred_check_branch
          %210 = sbr.rel (%p208) target = $region20
        $region19: #{tpu_custom_call.1} parent=11 // pred_region
          _
        $region20: #{tpu_custom_call.1} parent=11 // pred_fallthru
          _
        // Predicated region
        $region21: #{tpu_custom_call.1} parent=11 // pred_check
          %p211 = pneg %p120
        $region22: #{tpu_custom_call.1} parent=11 // pred_check_branch
          %213 = sbr.rel (%p211) target = $region24
        $region23: #{tpu_custom_call.1} parent=11 // pred_region
          _
        $region24: #{tpu_custom_call.1} parent=11 // pred_fallthru
          _
        // Predicated region
        $region25: #{tpu_custom_call.1} parent=11 // pred_check
          %p214 = pneg %p141
        $region26: #{tpu_custom_call.1} parent=11 // pred_check_branch
          %216 = sbr.rel (%p214) target = $region28
        $region27: #{tpu_custom_call.1} parent=11 // pred_region
          _
        $region28: #{tpu_custom_call.1} parent=11 // pred_fallthru
          _
        // Predicated region
        $region29: #{tpu_custom_call.1} parent=11 // pred_check
          %p217 = pneg %p162
        $region30: #{tpu_custom_call.1} parent=11 // pred_check_branch
          %219 = sbr.rel (%p217) target = $region32
        $region31: #{tpu_custom_call.1} parent=11 // pred_region
          _
        $region32: #{tpu_custom_call.1} parent=11 // pred_fallthru
          _
      $region12: #{tpu_custom_call.1} parent=5 // pred_fallthru
        _
      %p220 = scmp.lt.s32.totalorder %s15, 2
      // Predicated region
      $region33: #{tpu_custom_call.1} parent=5 // pred_check
        %p221 = pneg %p220
      $region34: #{tpu_custom_call.1} parent=5 // pred_check_branch
        %223 = sbr.rel (%p221) target = $region36
      $region35: #{tpu_custom_call.1} parent=5 // pred_region
        // Predicated region
        $region37: #{tpu_custom_call.1} parent=35 // pred_check
          %p224 = pneg %p51
        $region38: #{tpu_custom_call.1} parent=35 // pred_check_branch
          %226 = sbr.rel (%p224) target = $region40
        $region39: #{tpu_custom_call.1} parent=35 // pred_region
          %s227 = ssub.s32 1, %s22
          %s228 = smul.u32 %s23, %s227
          %p229 = scmp.lt.s32.totalorder %s228, 0
          %s230 = scalar_select %p229, %s228, 0
          %s231 = smul.addr %s230, 4
          %s232 = scalar_lea.vmem %s0, %s231
          %s233 = ssub.s32 1, %s22
          %s234 = smul.u32 %s23, %s233
        $region40: #{tpu_custom_call.1} parent=35 // pred_fallthru
          _
      $region36: #{tpu_custom_call.1} parent=5 // pred_fallthru
        _
      %p235 = scmp.le.s32.totalorder 1, %s15
      %p236 = scmp.lt.s32.totalorder %s15, 3
      %p237 = pnand %p235, %p236
      %p238 = pneg %p237
      // Predicated region
      $region41: #{tpu_custom_call.1} parent=5 // pred_check
        _
      $region42: #{tpu_custom_call.1} parent=5 // pred_check_branch
        %240 = sbr.rel (%p237) target = $region44
      $region43: #{tpu_custom_call.1} parent=5 // pred_region
        %s241 = ssub.s32 %s15, 1
        %s242 = ssub.s32 1, %s24
        %s243 = smul.u32 %s25, %s242
        %p244 = scmp.lt.s32.totalorder %s243, 0
        %s245 = scalar_select %p244, %s243, 0
        %s246 = smul.addr %s245, 4
        %s247 = scalar_lea.vmem %s0, %s246
        %p248 = pneg %p57
        %p249 = pneg %p54
        %p250 = pneg %p78
        %p251 = pneg %p75
        %p252 = pneg %p99
        %p253 = pneg %p96
        %p254 = pneg %p120
        %p255 = pneg %p117
        %p256 = pneg %p141
        %p257 = pneg %p138
        %p258 = pneg %p162
        %p259 = pneg %p159
        %p260 = pneg %p190
        %p261 = pneg %p187
        %s262 = sand.u32 %s177, 1
        %s263 = scalar_lea.sflag [#allocation8], %s262
        %s264 = sand.u32 %s177, 1
        %s265 = smul.addr %s264, 8
        %s266 = scalar_lea.vmem [#allocation7], %s265
        %s267 = ssub.s32 1, %s24
        %s268 = smul.u32 %s25, %s267
        %p269 = scmp.lt.s32.totalorder %s268, 0
        %s270 = scalar_select %p269, %s268, 0
        %s271 = smul.addr %s270, 4
        %s272 = scalar_lea.vmem %s0, %s271
        %s273 = ssub.s32 1, %s24
        %s274 = smul.u32 %s25, %s273
        %s275 = smul.u32 %s25, %s24
        %s277 = smul.u32 %s25, 8
        %p278 = scmp.eq.s32.totalorder %s24, 0
        // Predicated region
        $region45: #{tpu_custom_call.1} parent=43 // pred_check
          %p279 = pneg %p278
        $region46: #{tpu_custom_call.1} parent=43 // pred_check_branch
          %281 = sbr.rel (%p279) target = $region48
        $region47: #{tpu_custom_call.1} parent=43 // pred_region
          %p282 = scmp.eq.s32.totalorder %s25, 0
          // Predicated region
          $region49: #{tpu_custom_call.1} parent=47 // pred_check
            %p283 = pneg %p282
          $region50: #{tpu_custom_call.1} parent=47 // pred_check_branch
            %285 = sbr.rel (%p283) target = $region52
          $region51: #{tpu_custom_call.1} parent=47 // pred_region
            %vm286 = vcmask 122880
            %287 = vst.msk [vmem:[#allocation3] sm:$0x1] %vm286, 0.0
            %288 = vst.msk [vmem:[#allocation4] sm:$0x1] %vm286, 0.0
          $region52: #{tpu_custom_call.1} parent=47 // pred_fallthru
            _
          %v289 = vld [vmem:[%s272] sm:$0xf]
          %v290 = vld [vmem:[%s1] sm:$0xf]
          %v291 = vld [vmem:[%s1 + $0x4] sm:$0xf]
          %v292 = vld [vmem:[%s1 + $0x8] sm:$0xf]
          %v293 = vld [vmem:[%s1 + $0xc] sm:$0xf]
          %v298 = vunpack.c.l.b16 %v290
          %v299 = vunpack.c.l.b16 %v291
          %v300 = vunpack.c.l.b16 %v292
          %v301 = vunpack.c.l.b16 %v293
          %v302 = vpack.c.b16 %v299, %v298
          %v303 = vpack.c.b16 %v301, %v300
          %vm306 = vcmask 261120
          %v308 = vsel %vm306, %v289, 0
          %310 = vmatprep.subr.bf16.mxu0 0
          %311 = vmatpush1.bf16.msra.mxu0 %v302
          %312 = vmatprep.subr.bf16.mxu0 0
          %313 = vmatpush1.bf16.msra.mxu0 %v303
          %314 = vmatprep.subr.bf16.mxu0 0
          %315 = vmatpush1.bf16.msra.mxu0 0
          %316 = vmatprep.subr.bf16.mxu0 0
          %317 = vmatpush1.bf16.msra.mxu0 0
          %318 = vmatprep.subr.bf16.mxu0 0
          %319 = vmatpush1.bf16.msra.mxu0 0
          %320 = vmatprep.subr.bf16.mxu0 0
          %321 = vmatpush1.bf16.msra.mxu0 0
          %322 = vmatprep.subr.bf16.mxu0 0
          %323 = vmatpush1.bf16.msra.mxu0 0
          %324 = vmatprep.subr.bf16.mxu0 0
          %325 = vmatpush1.bf16.msra.mxu0 0
          %326 = vmatprep.subr.bf16.mxu0 0
          %327 = vmatpush1.bf16.msra.mxu0 0
          %328 = vmatprep.subr.bf16.mxu0 0
          %329 = vmatpush1.bf16.msra.mxu0 0
          %330 = vmatprep.subr.bf16.mxu0 0
          %331 = vmatpush1.bf16.msra.mxu0 0
          %332 = vmatprep.subr.bf16.mxu0 0
          %333 = vmatpush1.bf16.msra.mxu0 0
          %334 = vmatprep.subr.bf16.mxu0 0
          %335 = vmatpush1.bf16.msra.mxu0 0
          %336 = vmatprep.subr.bf16.mxu0 0
          %337 = vmatpush1.bf16.msra.mxu0 0
          %338 = vmatprep.subr.bf16.mxu0 0
          %339 = vmatpush1.bf16.msra.mxu0 0
          %340 = vmatprep.subr.bf16.mxu0 0
          %341 = vmatpush1.bf16.msra.mxu0 0
          %342 = vmatprep.mubr.bf16.mxu0 0
          %343 = vmatmul.mubr.bf16.gmra.mrb[0].mxu0 %v308
          %v344 = vpop.f32.mrb[0].mxu0
          %v345 = vadd.f32 0.0, %v344
          %v346 = vpop.f32.mrb[0].mxu0
          %v347 = vpop.f32.mrb[0].mxu0
          %v348 = vpop.f32.mrb[0].mxu0
          %349 = vdwg.mxu0
          %v350 = vpack.c.bf16 %v345, %v345
          %s351 = sshra.s32 %s277, 3
          %s352 = sand.u32 %s277, 7
          %s353 = smul.addr %s351, 4
          %s354 = scalar_lea.vmem [#allocation2], %s353
          %vm355 = vcmask 125952
          %356 = vst.msk [vmem:[%s354] sm:$0xf] %vm355, %v350
          %v357 = vld [vmem:[#allocation3] sm:$0x1]
          %vm358 = vcmask 130048
          %v359 = vsel %vm358, %v345, 0.0
          %v360 = vrot.slane %v359, 4
          %v361 = vadd.f32 %v359, %v360
          %v362 = vrot.slane %v361, 2
          %v363 = vadd.f32 %v361, %v362
          %v364 = vrot.slane %v363, 1
          %v365 = vadd.f32 %v363, %v364
          %v366 = vadd.f32 %v357, %v365
          %vm367 = vcmask 122880
          %368 = vst.msk [vmem:[#allocation3] sm:$0x1] %vm367, %v366
          %v369 = vld [vmem:[#allocation4] sm:$0x1]
          %v370 = vmul.f32 %v345, %v345
          %v371 = vsel %vm358, %v370, 0.0
          %v372 = vrot.slane %v371, 4
          %v373 = vadd.f32 %v371, %v372
          %v374 = vrot.slane %v373, 2
          %v375 = vadd.f32 %v373, %v374
          %v376 = vrot.slane %v375, 1
          %v377 = vadd.f32 %v375, %v376
          %v378 = vadd.f32 %v369, %v377
          %379 = vst.msk [vmem:[#allocation4] sm:$0x1] %vm367, %v378
        $region48: #{tpu_custom_call.1} parent=43 // pred_fallthru
          _
        %p380 = scmp.eq.s32.totalorder %s24, 1
        // Predicated region
        $region53: #{tpu_custom_call.1} parent=43 // pred_check
          %p381 = pneg %p380
        $region54: #{tpu_custom_call.1} parent=43 // pred_check_branch
          %383 = sbr.rel (%p381) target = $region56
        $region55: #{tpu_custom_call.1} parent=43 // pred_region
          %p384 = scmp.eq.s32.totalorder %s25, 0
          // Predicated region
          $region57: #{tpu_custom_call.1} parent=55 // pred_check
            %p385 = pneg %p384
          $region58: #{tpu_custom_call.1} parent=55 // pred_check_branch
            %387 = sbr.rel (%p385) target = $region60
          $region59: #{tpu_custom_call.1} parent=55 // pred_region
            %v388 = vld [vmem:[#allocation3] sm:$0x1]
            %v389 = vmul.f32 %v388, 0.125
            %v390 = vld [vmem:[#allocation4] sm:$0x1]
            %v391 = vmul.f32 %v390, 0.125
            %v392 = vmul.f32 %v389, %v389
            %v393 = vsub.f32 %v391, %v392
            %v394 = vmax.f32 %v393, 0.0
            %v395 = vld [vmem:[%s2] sm:$0x1]
            %v396 = vadd.f32 %v394, 1e-05
            %v397 = vrsqrt.pop %v396
            %v398 = vmul.f32 %v395, %v397
            %vm399 = vcmask 122880
            %400 = vst.msk [vmem:[#allocation5] sm:$0x1] %vm399, %v398
            %v401 = vld [vmem:[%s3] sm:$0x1]
            %v402 = vmul.f32 %v389, %v398
            %v403 = vsub.f32 %v401, %v402
            %404 = vst.msk [vmem:[#allocation6] sm:$0x1] %vm399, %v403
          $region60: #{tpu_custom_call.1} parent=55 // pred_fallthru
            _
          %s405 = sshra.s32 %s277, 3
          %s406 = sand.u32 %s277, 7
          %s407 = smul.addr %s405, 4
          %s408 = scalar_lea.vmem [#allocation2], %s407
          %v409 = vld [vmem:[%s408] sm:$0xf]
          %v410 = vunpack.c.l.bf16 %v409
          %v411 = vld [vmem:[#allocation5] sm:$0x1]
          %v413 = vlaneseq
          %v414 = vshrl.u32 %v413, 7
          %v415 = vsub.s32 0, %v414
          %v416 = vrot.slane %v411, %v415
          %v418 = vmul.f32 %v410, %v416
          %v419 = vld [vmem:[#allocation6] sm:$0x1]
          %v421 = vlaneseq
          %v422 = vshrl.u32 %v421, 7
          %v423 = vsub.s32 0, %v422
          %v424 = vrot.slane %v419, %v423
          %v426 = vadd.f32 %v418, %v424
          %v427 = vmax.f32 %v426, 0.0
          %v428 = vpack.c.bf16 %v427, %v427
          %v429 = vld [vmem:[%s4] sm:$0xf]
          %v430 = vld [vmem:[%s4 + $0x4] sm:$0xf]
          %v431 = vld [vmem:[%s5] sm:$0x1]
          %v433 = vlaneseq
          %v434 = vshrl.u32 %v433, 7
          %v435 = vsub.s32 0, %v434
          %v436 = vrot.slane %v431, %v435
          %v440 = vunpack.c.l.b16 %v429
          %v441 = vunpack.c.l.b16 %v430
          %v442 = vpack.c.b16 %v441, %v440
          %vm444 = vcmask 130048
          %v446 = vsel %vm444, %v428, 0
          %448 = vmatprep.subr.bf16.mxu0 0
          %449 = vmatpush1.bf16.msra.mxu0 %v442
          %450 = vmatprep.subr.bf16.mxu0 0
          %451 = vmatpush1.bf16.msra.mxu0 0
          %452 = vmatprep.subr.bf16.mxu0 0
          %453 = vmatpush1.bf16.msra.mxu0 0
          %454 = vmatprep.subr.bf16.mxu0 0
          %455 = vmatpush1.bf16.msra.mxu0 0
          %456 = vmatprep.subr.bf16.mxu0 0
          %457 = vmatpush1.bf16.msra.mxu0 0
          %458 = vmatprep.subr.bf16.mxu0 0
          %459 = vmatpush1.bf16.msra.mxu0 0
          %460 = vmatprep.subr.bf16.mxu0 0
          %461 = vmatpush1.bf16.msra.mxu0 0
          %462 = vmatprep.subr.bf16.mxu0 0
          %463 = vmatpush1.bf16.msra.mxu0 0
          %464 = vmatprep.subr.bf16.mxu0 0
          %465 = vmatpush1.bf16.msra.mxu0 0
          %466 = vmatprep.subr.bf16.mxu0 0
          %467 = vmatpush1.bf16.msra.mxu0 0
          %468 = vmatprep.subr.bf16.mxu0 0
          %469 = vmatpush1.bf16.msra.mxu0 0
          %470 = vmatprep.subr.bf16.mxu0 0
          %471 = vmatpush1.bf16.msra.mxu0 0
          %472 = vmatprep.subr.bf16.mxu0 0
          %473 = vmatpush1.bf16.msra.mxu0 0
          %474 = vmatprep.subr.bf16.mxu0 0
          %475 = vmatpush1.bf16.msra.mxu0 0
          %476 = vmatprep.subr.bf16.mxu0 0
          %477 = vmatpush1.bf16.msra.mxu0 0
          %478 = vmatprep.subr.bf16.mxu0 0
          %479 = vmatpush1.bf16.msra.mxu0 0
          %480 = vmatprep.mubr.bf16.mxu0 0
          %481 = vmatmul.mubr.bf16.gmra.mrb[0].mxu0 %v446
          %v482 = vpop.f32.mrb[0].mxu0
          %v483 = vadd.f32 %v436, %v482
          %v484 = vpop.f32.mrb[0].mxu0
          %v485 = vpop.f32.mrb[0].mxu0
          %v486 = vpop.f32.mrb[0].mxu0
          %487 = vdwg.mxu0
          %vm488 = vcmask 261120
          %489 = vst.msk [vmem:[%s266] sm:$0xff] %vm488, %v483
        $region56: #{tpu_custom_call.1} parent=43 // pred_fallthru
          _
        %s490 = sand.u32 %s177, 1
        %s491 = scalar_lea.sflag [#allocation8], %s490
        %s492 = sand.u32 %s177, 1
        %s493 = smul.addr %s492, 8
        %s494 = scalar_lea.vmem [#allocation7], %s493
        // Predicated region
        $region61: #{tpu_custom_call.1} parent=43 // pred_check
          %p495 = pneg %p187
        $region62: #{tpu_custom_call.1} parent=43 // pred_check_branch
          %497 = sbr.rel (%p495) target = $region64
        $region63: #{tpu_custom_call.1} parent=43 // pred_region
          %s498 = smul.u32 %s25, %s24
          %s500 = ssub.s32 128, 128
          %501 = vsyncadd %s491, %s500
          %s502 = smul.addr %s498, 128
          %s503 = scalar_lea.hbm %s6, %s502
          %s505 = sshll.u32 %s494, 4
          %s506 = int_to_ptr.vmem [resolvable:$true] %s505
          %508 = dma.vmem_to_hbm [thread:$0]  %s506, 128, %s503, %s491
        $region64: #{tpu_custom_call.1} parent=43 // pred_fallthru
          _
      $region44: #{tpu_custom_call.1} parent=5 // pred_fallthru
        _
      %p509 = scmp.le.s32.totalorder 2, %s15
      // Predicated region
      $region65: #{tpu_custom_call.1} parent=5 // pred_check
        %p510 = pneg %p509
      $region66: #{tpu_custom_call.1} parent=5 // pred_check_branch
        %512 = sbr.rel (%p510) target = $region68
      $region67: #{tpu_custom_call.1} parent=5 // pred_region
        %s513 = ssub.s32 %s15, 2
        // Predicated region
        $region69: #{tpu_custom_call.1} parent=67 // pred_check
          %p514 = pneg %p193
        $region70: #{tpu_custom_call.1} parent=67 // pred_check_branch
          %516 = sbr.rel (%p514) target = $region72
        $region71: #{tpu_custom_call.1} parent=67 // pred_region
          %s517 = sand.u32 %s178, 1
          %s518 = scalar_lea.sflag [#allocation8], %s517
          %s519 = sand.u32 %s178, 1
          %s520 = smul.addr %s519, 8
          %s521 = scalar_lea.vmem [#allocation7], %s520
          %522 = dma.done %s518, 128
        $region72: #{tpu_custom_call.1} parent=67 // pred_fallthru
          _
      $region68: #{tpu_custom_call.1} parent=5 // pred_fallthru
        _
    $region6: #{tpu_custom_call.1} parent=1 // loop_footer
      %s19 = sadd.s32 1, %s15
    $region7: #{tpu_custom_call.1} parent=1 // loop_footer_branch
      %14 = sbr.rel target = $region3
    $region8: #{tpu_custom_call.1} parent=1 // loop_exit
      _
    %523 = vsyncpa [#allocation8], 1
    %s524 = scalar_lea.sflag [#allocation8], 1
    %525 = vsyncpa %s524, 1

</llo_original>
